<compile_context>
chip_gen: v6e
topology: v6e:2x2x1
jax: 0.10.0
libtpu: 0.0.40
codegen_flags: <defaults>
</compile_context>

<pallas_src>
import jax
import jax.numpy as jnp
from jax.experimental import pallas as pl
from jax.experimental.pallas import tpu as pltpu

_LANE = 128


def _round_up(a: int, m: int) -> int:
    return -(-a // m) * m


def _chomp_copy_kernel(x_ref, o_ref):
    # x_ref tile: (TR, TC_in); o_ref tile: (TR, TC_out) with TC_in >= TC_out.
    # Static prefix slice on the lane axis (a no-op when the widths match,
    # e.g. in the column-tiled path).  This is the whole hot path.
    o_ref[...] = x_ref[:, : o_ref.shape[-1]]


def chomp1d(x: jax.Array, chomp_size: int, *, block_bytes: int = 6 * 1024 * 1024) -> jax.Array:
    """Pallas implementation of Chomp1d.forward for x of shape (N, C, L)."""
    n, c, l = x.shape
    # Strict parity note: PyTorch's x[:, :, :-0] would be *empty*; the TCN
    # always uses chomp_size >= 1, so we require it explicitly.
    if not (0 < chomp_size < l):
        raise ValueError(
            f"chomp_size must satisfy 0 < chomp_size < L, got {chomp_size} (L={l})"
        )
    l_out = l - chomp_size

    # Flatten (N, C) -> rows; contiguous merge, so the reshape is free.
    r = n * c
    x2 = x.reshape(r, l)

    itemsize = jnp.dtype(x.dtype).itemsize
    # Sublane multiple per dtype (f32: 8, bf16: 16, int8/fp8: 32).
    sublane = {4: 8, 2: 16, 1: 32}.get(itemsize, 8)

    # ---- Column tiling -------------------------------------------------
    # Full-width column block padded to the 128-lane boundary: the chomped
    # tail beyond that padding is never read from HBM.
    tc_full = _round_up(l_out, _LANE)
    # If even a single sublane-high strip of the full width exceeds the block
    # budget (skinny R, very long L), split L_out into balanced 128-multiple
    # column tiles so blocks stay bounded and the pipeline keeps >=2 steps.
    n_col = max(1, pl.cdiv(sublane * tc_full * itemsize, block_bytes))
    if n_col == 1:
        grid_c = 1
        out_tc = l_out                                # full output dim (legal)
        in_tc = tc_full if tc_full <= l else l        # skip tail when legal
    else:
        tc = _round_up(pl.cdiv(l_out, n_col), _LANE)
        grid_c = pl.cdiv(l_out, tc)
        in_tc = out_tc = tc

    # ---- Row tiling ----------------------------------------------------
    # Rows per block chosen purely from the byte budget (no min(512, ...) cap):
    # ~block_bytes of input per block; double-buffered in + out stays around
    # 4x that, comfortably inside the explicit vmem_limit_bytes below.
    tr = (block_bytes // max(1, in_tc * itemsize)) // sublane * sublane
    tr = max(sublane, tr)
    if tr >= r:
        if r <= sublane:
            tr = r  # full-extent row block (legal regardless of alignment)
        else:
            # Keep >= 2 row tiles so both v7x TensorCores get work and the
            # input-fetch / output-writeback DMAs can overlap across steps.
            tr = _round_up(pl.cdiv(r, 2), sublane)
    grid_r = pl.cdiv(r, tr)

    # Advisory cost hint: pure-copy byte traffic (reads may over-fetch at most
    # a partial column tile past L_out, clipped to the physical row length L).
    read_cols = min(grid_c * in_tc, l)
    bytes_accessed = (r * read_cols + r * l_out) * itemsize

    out2 = pl.pallas_call(
        _chomp_copy_kernel,
        out_shape=jax.ShapeDtypeStruct((r, l_out), x.dtype),
        grid_spec=pltpu.PrefetchScalarGridSpec(
            num_scalar_prefetch=0,
            grid=(grid_r, grid_c),
            in_specs=[pl.BlockSpec((tr, in_tc), lambda i, j: (i, j))],
            out_specs=pl.BlockSpec((tr, out_tc), lambda i, j: (i, j)),
        ),
        compiler_params=pltpu.CompilerParams(
            dimension_semantics=("parallel", "parallel"),
            # Explicit limit: keeps full double-buffering on v5e (16 MiB
            # scoped default) and leaves headroom under v7x's 64 MiB physical.
            vmem_limit_bytes=48 * 1024 * 1024,
        ),
        cost_estimate=pl.CostEstimate(
            flops=0, transcendentals=0, bytes_accessed=bytes_accessed
        ),
    )(x2)

    return out2.reshape(n, c, l_out)


if __name__ == "__main__":
    key = jax.random.PRNGKey(0)

    # Small shape consistent with the module's (N, C, L) convention.
    N, C, L = 2, 4, 16
    chomp = 3
    x = jax.random.normal(key, (N, C, L), dtype=jnp.float32)
    out = jax.block_until_ready(chomp1d(x, chomp))
    ref = x[:, :, :-chomp]
    assert out.shape == ref.shape, out.shape
    assert out.dtype == x.dtype
    assert jnp.array_equal(out, ref), "Pallas Chomp1d mismatch vs reference"

    # Multi-step row-tiled grid with 128-aligned L_out (tail never read).
    x2 = jax.random.normal(jax.random.PRNGKey(1), (8, 96, 384), jnp.float32)
    out2 = jax.block_until_ready(chomp1d(x2, 128, block_bytes=64 * 1024))
    assert jnp.array_equal(out2, x2[:, :, :-128]), "mismatch (row-tiled path)"

    # Non-128-aligned L_out where round_up(L_out, 128) > L: input block falls
    # back to full rows and the kernel's static prefix slice does the chomp.
    x3 = jax.random.normal(jax.random.PRNGKey(2), (2, 4, 200), jnp.float32)
    out3 = jax.block_until_ready(chomp1d(x3, 57))
    assert jnp.array_equal(out3, x3[:, :, :-57]), "mismatch (unaligned path)"

    # bf16 with a tiny block budget to exercise the 2-D (row x column) grid.
    x4 = jax.random.normal(jax.random.PRNGKey(3), (2, 4, 1024), jnp.bfloat16)
    out4 = jax.block_until_ready(chomp1d(x4, 100, block_bytes=16 * 1024))
    assert jnp.array_equal(out4, x4[:, :, :-100]), "mismatch (column-tiled path)"

    print("KERNEL_OK")
</pallas_src>

<mosaic_0001>
module attributes {stable_mosaic.version = 11 : i64} {
  func.func @_chomp_copy_kernel(%arg0: i32, %arg1: i32, %arg2: memref<8x16xf32, #tpu.memory_space<vmem>>, %arg3: memref<8x13xf32, #tpu.memory_space<vmem>>) attributes {dimension_semantics = [#tpu.dimension_semantics<parallel>, #tpu.dimension_semantics<parallel>], iteration_bounds = array<i64: 1, 1>, scalar_prefetch = 0 : i64, scratch_operands = 0 : i64, tpu.core_type = #tpu.core_type<tc>, window_params = [{transform_indices = @transform_0, window_bounds = array<i64: 8, 16>}, {transform_indices = @transform_1, window_bounds = array<i64: 8, 13>}]} {
    %c0 = arith.constant 0 : index
    %c0_0 = arith.constant 0 : index
    %0 = vector.load %arg2[%c0, %c0_0] : memref<8x16xf32, #tpu.memory_space<vmem>>, vector<8x13xf32>
    %c0_1 = arith.constant 0 : index
    %c0_2 = arith.constant 0 : index
    %1 = vector.load %arg3[%c0_1, %c0_2] : memref<8x13xf32, #tpu.memory_space<vmem>>, vector<8x13xf32>
    tpu.vector_store %arg3[%c0_1, %c0_2], %0 {strides = array<i32>} : memref<8x13xf32, #tpu.memory_space<vmem>>, vector<8x13xf32>,
    return
  }
  func.func @transform_0(%arg0: i32, %arg1: i32) -> (i32, i32) {
    %c0_i32 = arith.constant 0 : i32
    return %arg0, %arg1 : i32, i32
  }
  func.func @transform_1(%arg0: i32, %arg1: i32) -> (i32, i32) {
    %c0_i32 = arith.constant 0 : i32
    return %arg0, %arg1 : i32, i32
  }
}

</mosaic_0001>

<llo_original>
// kernel: tpu_custom_call.1
$region0: #{tpu_custom_call.1}
  #allocation0 [shape = 'u32[]', space=smem, size = 0x4, offset = 0x4, fixed_abs, tag = 'smem constant byte address 0x4 - core index']
  #allocation1 [shape = 'u32[144,128]{1,0:T(1,128)}', space=vmem, size = 0x12000, scoped, tag = 'internal scratch']
  %s0 = inlined_call_operand.hbm [shape: f32[8,16], index: 0, kind: input, shape index: {}]
  %s1 = inlined_call_operand.hbm [shape: f32[8,13], index: 1, kind: output, shape index: {}]
  %s2 = sld [smem:[#allocation0]]
  $region18: #{tpu_custom_call.1} parent=0
    _
  %s4 = ssub.s32 1, %s2
  %s5 = scalar_select 0, %s4, %s2
  $region1: #{tpu_custom_call.1} parent=0
    #allocation2 [shape = 'u8[4096]{0}', space=vmem, size = 0x1000, scoped, tag = 'input window, operand 0, single buffered']
    #allocation3 [shape = 's32[1]{0}', space=sflag, size = 0x4, scoped, tag = 'scoped memory for tpu_custom_call.1']
    #allocation4 [shape = 's32[1]{0}', space=sflag, size = 0x4, scoped, tag = 'scoped memory for tpu_custom_call.1']
    #allocation5 [shape = 'u8[4096]{0}', space=vmem, size = 0x1000, scoped, tag = 'output window, operand 0, single buffered']
    %6 = vsyncpa [#allocation3], 0
    %7 = vsyncpa [#allocation4], 0
    // Predicated region
    $region2: #{tpu_custom_call.1} parent=1 // pred_check
      _
    $region3: #{tpu_custom_call.1} parent=1 // pred_check_branch
      %9 = sbr.rel (0) target = $region5
    $region4: #{tpu_custom_call.1} parent=1 // pred_region
      %s11 = ssub.s32 128, 128
      %12 = vsyncadd [#allocation3], %s11
      %s14 = sshll.u32 [#allocation2], 4
      %s15 = int_to_ptr.vmem [resolvable:$true] %s14
      %17 = dma.hbm_to_vmem [thread:$0]  %s0, 128, %s15, [#allocation3]
    $region5: #{tpu_custom_call.1} parent=1 // pred_fallthru
      _
    // Predicated region
    $region6: #{tpu_custom_call.1} parent=1 // pred_check
      _
    $region7: #{tpu_custom_call.1} parent=1 // pred_check_branch
      %19 = sbr.rel (0) target = $region9
    $region8: #{tpu_custom_call.1} parent=1 // pred_region
      %20 = dma.done [#allocation3], 128
    $region9: #{tpu_custom_call.1} parent=1 // pred_fallthru
      _
    %v21 = vld [vmem:[#allocation2] sm:$0xff]
    %vm22 = vcmask 105472
    %23 = vst.msk [vmem:[#allocation5] sm:$0xff] %vm22, %v21
    // Predicated region
    $region10: #{tpu_custom_call.1} parent=1 // pred_check
      _
    $region11: #{tpu_custom_call.1} parent=1 // pred_check_branch
      %25 = sbr.rel (0) target = $region13
    $region12: #{tpu_custom_call.1} parent=1 // pred_region
      %s27 = ssub.s32 128, 128
      %28 = vsyncadd [#allocation4], %s27
      %s30 = sshll.u32 [#allocation5], 4
      %s31 = int_to_ptr.vmem [resolvable:$true] %s30
      %33 = dma.vmem_to_hbm [thread:$0]  %s31, 128, %s1, [#allocation4]
    $region13: #{tpu_custom_call.1} parent=1 // pred_fallthru
      _
    // Predicated region
    $region14: #{tpu_custom_call.1} parent=1 // pred_check
      _
    $region15: #{tpu_custom_call.1} parent=1 // pred_check_branch
      %35 = sbr.rel (0) target = $region17
    $region16: #{tpu_custom_call.1} parent=1 // pred_region
      %36 = dma.done [#allocation4], 128
    $region17: #{tpu_custom_call.1} parent=1 // pred_fallthru
      _
    %37 = vsyncpa [#allocation3], 1
    %38 = vsyncpa [#allocation4], 1

</llo_original>
